<compile_context>
chip_gen: v6e
topology: v6e:2x2x1
jax: 0.10.0
libtpu: 0.0.40
codegen_flags: <defaults>
</compile_context>

<pallas_src>
import functools

import jax
import jax.numpy as jnp
from jax import lax
from jax.experimental import pallas as pl
from jax.experimental.pallas import tpu as pltpu


def _conv1x1(wmat, edge, use_mxu):
    """(C_out, C_in) @ (C_in, P) -> (C_out, P) with f32 accumulation."""
    if use_mxu:
        # wmat is pre-cast to bf16 in the wrapper; bf16 x bf16 -> f32 on the MXU.
        return jnp.dot(wmat, edge.astype(jnp.bfloat16),
                       preferred_element_type=jnp.float32)
    # Small C: the MXU would run nearly empty; do C rank-1 VPU updates instead.
    C = wmat.shape[1]
    y = wmat[:, 0:1] * edge[0:1, :]
    for ci in range(1, C):
        y = y + wmat[:, ci:ci + 1] * edge[ci:ci + 1, :]
    return y


def _edge_enhancer_kernel(*refs, H, W, TH, Bt, use_mxu, tiled):
    if tiled:
        x_ref, x_hbm, w_ref, b_ref, o_ref, halo_ref, sem_ref = refs
    else:
        x_ref, w_ref, b_ref, o_ref = refs

    THW = TH * W
    nb = pl.program_id(0)          # batch-tile index
    t = pl.program_id(1)           # H-tile index

    # ---- kick off the (tiny) halo-row fetches first so they overlap the main work ----
    if tiled:
        row0 = t * TH
        row_top = jnp.maximum(row0 - 1, 0)        # clamped; contribution masked at t == 0
        row_bot = jnp.minimum(row0 + TH, H - 1)   # clamped; contribution masked at t == last
        top_cp = pltpu.make_async_copy(
            x_hbm.at[pl.ds(nb * Bt, Bt), :, pl.ds(row_top * W, W)],
            halo_ref.at[0], sem_ref.at[0])
        bot_cp = pltpu.make_async_copy(
            x_hbm.at[pl.ds(nb * Bt, Bt), :, pl.ds(row_bot * W, W)],
            halo_ref.at[1], sem_ref.at[1])
        top_cp.start()
        bot_cp.start()

    # ---- 0/1 boundary masks from an in-kernel iota (no HBM traffic) ----
    idx = lax.broadcasted_iota(jnp.int32, (1, THW), 1)
    col = idx % W
    m_left = (col != 0).astype(jnp.float32)
    m_right = (col != W - 1).astype(jnp.float32)
    m_up = (idx >= W).astype(jnp.float32)          # tile-local row > 0
    m_down = (idx < THW - W).astype(jnp.float32)   # tile-local row < TH-1

    wmat = w_ref[...]
    bias = b_ref[...]

    pooled_top = []
    pooled_bot = []
    for b in range(Bt):
        # -- separable 3x3 avg pool, stride 1, zero pad 1 (count_include_pad -> /9) --
        xf = x_ref[b].astype(jnp.float32)                     # (C, TH*W)
        left = pltpu.roll(xf, shift=1, axis=1)                # value from flat index i-1
        right = pltpu.roll(xf, shift=THW - 1, axis=1)         # value from flat index i+1
        sw = xf + left * m_left + right * m_right
        up = pltpu.roll(sw, shift=W, axis=1)                  # value from flat index i-W
        down = pltpu.roll(sw, shift=THW - W, axis=1)          # value from flat index i+W
        pooled = (sw + up * m_up + down * m_down) * (1.0 / 9.0)
        if tiled:
            pooled_top.append(pooled[:, 0:W])                 # tile row 0 (halo term missing)
            pooled_bot.append(pooled[:, THW - W:THW])         # tile row TH-1 (halo term missing)

        # -- 1x1 conv (BN scale folded), BN bias, sigmoid (EUP), residual --
        y = jax.nn.sigmoid(_conv1x1(wmat, xf - pooled, use_mxu) + bias)
        o_ref[b] = (x_ref[b].astype(jnp.float32) + y).astype(o_ref.dtype)

    if not tiled:
        return

    # ---- halo fix-up: recompute the tile's first / last rows with the true neighbour
    #      rows and overwrite them in the output (main data stayed auto-pipelined) ----
    top_cp.wait()
    bot_cp.wait()
    valid_top = (t > 0).astype(jnp.float32)
    valid_bot = (t < pl.num_programs(1) - 1).astype(jnp.float32)
    m_left_w = m_left[:, 0:W]
    m_right_w = m_right[:, 0:W]

    for b in range(Bt):
        def wsum(h):                                           # 3-tap sum along W for one row
            return (h + pltpu.roll(h, shift=1, axis=1) * m_left_w
                    + pltpu.roll(h, shift=W - 1, axis=1) * m_right_w)

        p_top = pooled_top[b] + wsum(halo_ref[0, b].astype(jnp.float32)) * (valid_top / 9.0)
        p_bot = pooled_bot[b] + wsum(halo_ref[1, b].astype(jnp.float32)) * (valid_bot / 9.0)

        for p_row, dst in ((p_top, 0), (p_bot, THW - W)):
            x_row = x_ref[b, :, dst:dst + W].astype(jnp.float32)          # (C, W)
            y = jax.nn.sigmoid(_conv1x1(wmat, x_row - p_row, use_mxu) + bias)
            o_ref[b, :, dst:dst + W] = (x_row + y).astype(o_ref.dtype)


def edge_enhancer(x_nchw, conv_w, bn_gamma, bn_beta, bn_mean, bn_var, eps=1e-5,
                  *, tile_h=None, batch_tile=None):
    """x_nchw: (N, C, H, W); conv_w: (C, C, 1, 1). Returns (N, C, H, W)."""
    N, C, H, W = x_nchw.shape
    HW = H * W
    x_flat = x_nchw.reshape(N, C, HW)               # free reshape, lane dim = H*W
    itemsize = x_flat.dtype.itemsize

    # MXU already wins around C ~ 16 (perf review); below that, rank-1 VPU updates.
    use_mxu = C >= 16

    # Fold BatchNorm (inference) into the 1x1-conv weight / bias.
    scale = (bn_gamma / jnp.sqrt(bn_var + eps)).astype(jnp.float32)
    w = conv_w.reshape(C, C).astype(jnp.float32) * scale[:, None]
    w = w.astype(jnp.bfloat16) if use_mxu else w     # pre-cast once: no in-kernel cast
    bias = (bn_beta - bn_mean * scale).astype(jnp.float32).reshape(C, 1)

    # ---- VMEM budget: physical per-core capacity with ~25% headroom (v7x = 64 MiB) ----
    try:
        vmem_cap = pltpu.get_tpu_info().vmem_capacity_bytes
    except Exception:
        vmem_cap = 64 * 1024 * 1024                  # v7x-safe fallback
    budget = int(vmem_cap) * 3 // 4

    w_bytes = C * C * w.dtype.itemsize

    def step_bytes(bt, th):
        blk = bt * C * th * W
        io = 4 * blk * itemsize                      # double-buffered input + output blocks
        tmp = 6 * blk * 4                            # live f32 temporaries (pool / conv)
        halo = 4 * bt * C * W * itemsize             # 2 halo rows
        return io + tmp + 2 * w_bytes + halo + (1 << 20)

    # ---- H tile: biggest divisor of H that fits the budget (lane-dense: TH*W % 128 == 0) ----
    if tile_h is None:
        cands = [th for th in range(H, 0, -1)
                 if H % th == 0 and (th == H or (th >= 2 and (th * W) % 128 == 0))]
        tile_h = next((th for th in cands if step_bytes(1, th) <= budget), cands[-1])
        # TODO(synk): if even the smallest legal H tile blows the budget (huge W),
        # add a W-tiling grid axis with a 1-column halo as well.
    TH = int(tile_h)
    assert H % TH == 0, "tile_h must divide H"
    tiled = TH < H

    # ---- batch tile: amortize per-step overhead when whole-image blocks are tiny ----
    if batch_tile is None:
        batch_tile = 1
        if not tiled:
            for bt in range(N, 0, -1):
                if (N % bt == 0 and bt * C * HW * itemsize <= 2 * 1024 * 1024
                        and step_bytes(bt, TH) <= budget):
                    batch_tile = bt
                    break
    Bt = int(batch_tile)
    assert N % Bt == 0, "batch_tile must divide N"

    grid = (N // Bt, H // TH)
    vmem_limit = int(min(budget, max(3 * step_bytes(Bt, TH) // 2, 32 * 1024 * 1024)))

    kernel = functools.partial(_edge_enhancer_kernel, H=H, W=W, TH=TH, Bt=Bt,
                               use_mxu=use_mxu, tiled=tiled)

    in_specs = [pl.BlockSpec((Bt, C, TH * W), lambda nb, t: (nb, 0, t))]   # x tile
    operands = [x_flat]
    scratch = []
    if tiled:
        in_specs.append(pl.BlockSpec(memory_space=pl.ANY))   # full x in HBM (halo rows)
        operands.append(x_flat)
        scratch = [pltpu.VMEM((2, Bt, C, W), x_flat.dtype),   # top/bottom halo rows
                   pltpu.SemaphoreType.DMA((2,))]
    in_specs += [pl.BlockSpec((C, C), lambda nb, t: (0, 0)),  # folded conv weight
                 pl.BlockSpec((C, 1), lambda nb, t: (0, 0))]  # folded BN bias
    operands += [w, bias]

    out = pl.pallas_call(
        kernel,
        out_shape=jax.ShapeDtypeStruct((N, C, HW), x_flat.dtype),
        grid_spec=pltpu.PrefetchScalarGridSpec(
            num_scalar_prefetch=0,
            grid=grid,
            in_specs=in_specs,
            out_specs=pl.BlockSpec((Bt, C, TH * W), lambda nb, t: (nb, 0, t)),
            scratch_shapes=scratch,
        ),
        compiler_params=pltpu.CompilerParams(
            dimension_semantics=("parallel", "parallel"),
            vmem_limit_bytes=vmem_limit,
        ),
    )(*operands)

    return out.reshape(N, C, H, W)                   # free reshape back to NCHW


def _reference(x_nchw, conv_w, bn_gamma, bn_beta, bn_mean, bn_var, eps=1e-5):
    # Pure-JAX reference mirroring the PyTorch module (NCHW, BN in eval mode).
    N, C, H, W = x_nchw.shape
    x = x_nchw.astype(jnp.float32)
    pooled = lax.reduce_window(
        x, 0.0, lax.add, window_dimensions=(1, 1, 3, 3),
        window_strides=(1, 1, 1, 1),
        padding=((0, 0), (0, 0), (1, 1), (1, 1))) / 9.0
    edge = x - pooled
    wmat = conv_w.reshape(C, C).astype(jnp.float32)
    y = jnp.einsum("nchw,oc->nohw", edge, wmat)
    scale = (bn_gamma / jnp.sqrt(bn_var + eps)).reshape(1, C, 1, 1)
    bias = (bn_beta - bn_mean * (bn_gamma / jnp.sqrt(bn_var + eps))).reshape(1, C, 1, 1)
    y = jax.nn.sigmoid(y * scale + bias)
    return (x + y).astype(x_nchw.dtype)


if __name__ == "__main__":
    key = jax.random.PRNGKey(0)

    def make_params(k, C):
        kw, kg, kb, km, kv = jax.random.split(k, 5)
        conv_w = jax.random.normal(kw, (C, C, 1, 1), dtype=jnp.float32) * 0.1
        bn_gamma = 1.0 + 0.1 * jax.random.normal(kg, (C,), dtype=jnp.float32)
        bn_beta = 0.1 * jax.random.normal(kb, (C,), dtype=jnp.float32)
        bn_mean = 0.1 * jax.random.normal(km, (C,), dtype=jnp.float32)
        bn_var = jnp.abs(jax.random.normal(kv, (C,), dtype=jnp.float32)) + 0.5
        return conv_w, bn_gamma, bn_beta, bn_mean, bn_var

    k_x1, k_p1, k_x2, k_p2 = jax.random.split(key, 4)

    # 1) small C (VPU conv path), auto tiling: whole image per step, batch-tiled.
    N, C, H, W = 2, 4, 16, 16
    x = jax.random.normal(k_x1, (N, C, H, W), dtype=jnp.float32)
    params = make_params(k_p1, C)
    ref = _reference(x, *params)
    out = jax.block_until_ready(edge_enhancer(x, *params))
    assert out.shape == (N, C, H, W)
    assert jnp.allclose(out, ref, atol=1e-5, rtol=1e-5), "mismatch: auto path"

    # 2) forced H tiling: exercises the halo DMA + boundary fix-up path.
    out_t = jax.block_until_ready(edge_enhancer(x, *params, tile_h=8, batch_tile=1))
    assert jnp.allclose(out_t, ref, atol=1e-5, rtol=1e-5), "mismatch: H-tiled path"

    # 3) C >= 16 -> MXU conv path (bf16 operands, f32 accumulation): relaxed tolerance.
    C2 = 32
    x2 = jax.random.normal(k_x2, (N, C2, H, W), dtype=jnp.float32)
    params2 = make_params(k_p2, C2)
    ref2 = _reference(x2, *params2)
    out2 = jax.block_until_ready(edge_enhancer(x2, *params2))
    assert jnp.allclose(out2, ref2, atol=1e-2, rtol=1e-2), "mismatch: MXU path"

    # 4) MXU + forced H tiling + batch tiling together.
    out2_t = jax.block_until_ready(edge_enhancer(x2, *params2, tile_h=8, batch_tile=2))
    assert jnp.allclose(out2_t, ref2, atol=1e-2, rtol=1e-2), "mismatch: MXU tiled path"

    print("KERNEL_OK")
</pallas_src>

<mosaic_0001>
module attributes {stable_mosaic.version = 11 : i64} {
  func.func @_edge_enhancer_kernel(%arg0: i32, %arg1: i32, %arg2: memref<2x4x256xf32, #tpu.memory_space<vmem>>, %arg3: memref<4x4xf32, #tpu.memory_space<vmem>>, %arg4: memref<4x1xf32, #tpu.memory_space<vmem>>, %arg5: memref<2x4x256xf32, #tpu.memory_space<vmem>>) attributes {dimension_semantics = [#tpu.dimension_semantics<parallel>, #tpu.dimension_semantics<parallel>], iteration_bounds = array<i64: 1, 1>, scalar_prefetch = 0 : i64, scratch_operands = 0 : i64, tpu.core_type = #tpu.core_type<tc>, window_params = [{transform_indices = @transform_0, window_bounds = array<i64: 2, 4, 256>}, {pipeline_mode = #tpu.pipeline_mode<synchronous>, transform_indices = @transform_1, window_bounds = array<i64: 4, 4>}, {pipeline_mode = #tpu.pipeline_mode<synchronous>, transform_indices = @transform_2, window_bounds = array<i64: 4, 1>}, {transform_indices = @transform_3, window_bounds = array<i64: 2, 4, 256>}]} {
    %0 = tpu.iota {dimensions = array<i32: 1>} : vector<1x256xi32>
    %c16_i32 = arith.constant 16 : i32
    %c0_i32 = arith.constant 0 : i32
    %1 = arith.cmpi eq, %c16_i32, %c0_i32 : i32
    %c1_i32 = arith.constant 1 : i32
    %2 = arith.select %1, %c1_i32, %c16_i32 : i32
    %3 = vector.broadcast %2 : i32 to vector<1x256xi32>
    %4 = arith.remsi %0, %3 : vector<1x256xi32>
    %c0_i32_0 = arith.constant 0 : i32
    %5 = vector.broadcast %c0_i32_0 : i32 to vector<1x256xi32>
    %6 = arith.cmpi ne, %4, %5 : vector<1x256xi32>
    %c0_i32_1 = arith.constant 0 : i32
    %7 = vector.broadcast %c0_i32_1 : i32 to vector<1x256xi32>
    %8 = arith.cmpi slt, %4, %7 : vector<1x256xi32>
    %c0_i32_2 = arith.constant 0 : i32
    %9 = arith.cmpi slt, %2, %c0_i32_2 : i32
    %10 = vector.broadcast %9 : i1 to vector<1x256xi1>
    %11 = vector.broadcast %10 : vector<1x256xi1> to vector<1x256xi1>
    %12 = arith.xori %8, %11 : vector<1x256xi1>
    %13 = arith.andi %12, %6 : vector<1x256xi1>
    %14 = vector.broadcast %2 : i32 to vector<1x256xi32>
    %15 = arith.addi %4, %14 : vector<1x256xi32>
    %16 = arith.select %13, %15, %4 : vector<1x256xi1>, vector<1x256xi32>
    %c0_i32_3 = arith.constant 0 : i32
    %17 = vector.broadcast %c0_i32_3 : i32 to vector<1x256xi32>
    %18 = arith.cmpi ne, %16, %17 : vector<1x256xi32>
    %19 = arith.extui %18 : vector<1x256xi1> to vector<1x256xi32>
    %20 = arith.sitofp %19 : vector<1x256xi32> to vector<1x256xf32>
    %c15_i32 = arith.constant 15 : i32
    %21 = vector.broadcast %c15_i32 : i32 to vector<1x256xi32>
    %22 = arith.cmpi ne, %16, %21 : vector<1x256xi32>
    %23 = arith.extui %22 : vector<1x256xi1> to vector<1x256xi32>
    %24 = arith.sitofp %23 : vector<1x256xi32> to vector<1x256xf32>
    %c16_i32_4 = arith.constant 16 : i32
    %25 = vector.broadcast %c16_i32_4 : i32 to vector<1x256xi32>
    %26 = arith.cmpi sge, %0, %25 : vector<1x256xi32>
    %27 = arith.extui %26 : vector<1x256xi1> to vector<1x256xi32>
    %28 = arith.sitofp %27 : vector<1x256xi32> to vector<1x256xf32>
    %c240_i32 = arith.constant 240 : i32
    %29 = vector.broadcast %c240_i32 : i32 to vector<1x256xi32>
    %30 = arith.cmpi slt, %0, %29 : vector<1x256xi32>
    %31 = arith.extui %30 : vector<1x256xi1> to vector<1x256xi32>
    %32 = arith.sitofp %31 : vector<1x256xi32> to vector<1x256xf32>
    %c0 = arith.constant 0 : index
    %c0_5 = arith.constant 0 : index
    %33 = vector.load %arg3[%c0, %c0_5] : memref<4x4xf32, #tpu.memory_space<vmem>>, vector<4x4xf32>
    %c0_6 = arith.constant 0 : index
    %c0_7 = arith.constant 0 : index
    %34 = vector.load %arg4[%c0_6, %c0_7] : memref<4x1xf32, #tpu.memory_space<vmem>>, vector<4x1xf32>
    %c0_8 = arith.constant 0 : index
    %c0_9 = arith.constant 0 : index
    %c0_10 = arith.constant 0 : index
    %35 = vector.load %arg2[%c0_8, %c0_9, %c0_10] : memref<2x4x256xf32, #tpu.memory_space<vmem>>, vector<1x4x256xf32>
    %36 = vector.shape_cast %35 : vector<1x4x256xf32> to vector<4x256xf32>
    %c1_i32_11 = arith.constant 1 : i32
    %37 = tpu.dynamic_rotate %36 by %c1_i32_11 dim 1 : vector<4x256xf32>, i32 -> vector<4x256xf32>
    %c255_i32 = arith.constant 255 : i32
    %38 = tpu.dynamic_rotate %36 by %c255_i32 dim 1 : vector<4x256xf32>, i32 -> vector<4x256xf32>
    %39 = vector.broadcast %20 : vector<1x256xf32> to vector<4x256xf32>
    %40 = arith.mulf %37, %39 : vector<4x256xf32>
    %41 = arith.addf %36, %40 : vector<4x256xf32>
    %42 = vector.broadcast %24 : vector<1x256xf32> to vector<4x256xf32>
    %43 = arith.mulf %38, %42 : vector<4x256xf32>
    %44 = arith.addf %41, %43 : vector<4x256xf32>
    %c16_i32_12 = arith.constant 16 : i32
    %45 = tpu.dynamic_rotate %44 by %c16_i32_12 dim 1 : vector<4x256xf32>, i32 -> vector<4x256xf32>
    %c240_i32_13 = arith.constant 240 : i32
    %46 = tpu.dynamic_rotate %44 by %c240_i32_13 dim 1 : vector<4x256xf32>, i32 -> vector<4x256xf32>
    %47 = vector.broadcast %28 : vector<1x256xf32> to vector<4x256xf32>
    %48 = arith.mulf %45, %47 : vector<4x256xf32>
    %49 = arith.addf %44, %48 : vector<4x256xf32>
    %50 = vector.broadcast %32 : vector<1x256xf32> to vector<4x256xf32>
    %51 = arith.mulf %46, %50 : vector<4x256xf32>
    %52 = arith.addf %49, %51 : vector<4x256xf32>
    %cst = arith.constant 0.111111112 : f32
    %53 = vector.broadcast %cst : f32 to vector<4x256xf32>
    %54 = arith.mulf %52, %53 : vector<4x256xf32>
    %55 = arith.subf %36, %54 : vector<4x256xf32>
    %56 = vector.extract_strided_slice %33 {offsets = [0, 0], sizes = [4, 1], strides = [1, 1]} : vector<4x4xf32> to vector<4x1xf32>
    %57 = vector.extract_strided_slice %55 {offsets = [0, 0], sizes = [1, 256], strides = [1, 1]} : vector<4x256xf32> to vector<1x256xf32>
    %58 = vector.broadcast %56 : vector<4x1xf32> to vector<4x256xf32>
    %59 = vector.broadcast %57 : vector<1x256xf32> to vector<4x256xf32>
    %60 = arith.mulf %58, %59 : vector<4x256xf32>
    %61 = vector.extract_strided_slice %33 {offsets = [0, 1], sizes = [4, 1], strides = [1, 1]} : vector<4x4xf32> to vector<4x1xf32>
    %62 = vector.extract_strided_slice %55 {offsets = [1, 0], sizes = [1, 256], strides = [1, 1]} : vector<4x256xf32> to vector<1x256xf32>
    %63 = vector.broadcast %61 : vector<4x1xf32> to vector<4x256xf32>
    %64 = vector.broadcast %62 : vector<1x256xf32> to vector<4x256xf32>
    %65 = arith.mulf %63, %64 : vector<4x256xf32>
    %66 = arith.addf %60, %65 : vector<4x256xf32>
    %67 = vector.extract_strided_slice %33 {offsets = [0, 2], sizes = [4, 1], strides = [1, 1]} : vector<4x4xf32> to vector<4x1xf32>
    %68 = vector.extract_strided_slice %55 {offsets = [2, 0], sizes = [1, 256], strides = [1, 1]} : vector<4x256xf32> to vector<1x256xf32>
    %69 = vector.broadcast %67 : vector<4x1xf32> to vector<4x256xf32>
    %70 = vector.broadcast %68 : vector<1x256xf32> to vector<4x256xf32>
    %71 = arith.mulf %69, %70 : vector<4x256xf32>
    %72 = arith.addf %66, %71 : vector<4x256xf32>
    %73 = vector.extract_strided_slice %33 {offsets = [0, 3], sizes = [4, 1], strides = [1, 1]} : vector<4x4xf32> to vector<4x1xf32>
    %74 = vector.extract_strided_slice %55 {offsets = [3, 0], sizes = [1, 256], strides = [1, 1]} : vector<4x256xf32> to vector<1x256xf32>
    %75 = vector.broadcast %73 : vector<4x1xf32> to vector<4x256xf32>
    %76 = vector.broadcast %74 : vector<1x256xf32> to vector<4x256xf32>
    %77 = arith.mulf %75, %76 : vector<4x256xf32>
    %78 = arith.addf %72, %77 : vector<4x256xf32>
    %79 = vector.broadcast %34 : vector<4x1xf32> to vector<4x256xf32>
    %80 = arith.addf %78, %79 : vector<4x256xf32>
    %81 = arith.negf %80 : vector<4x256xf32>
    %82 = math.exp %81 : vector<4x256xf32>
    %cst_14 = arith.constant 1.000000e+00 : f32
    %83 = vector.broadcast %cst_14 : f32 to vector<4x256xf32>
    %84 = arith.addf %83, %82 : vector<4x256xf32>
    %85 = arith.divf %83, %84 : vector<4x256xf32>
    %c0_15 = arith.constant 0 : index
    %c0_16 = arith.constant 0 : index
    %c0_17 = arith.constant 0 : index
    %86 = vector.load %arg2[%c0_15, %c0_16, %c0_17] : memref<2x4x256xf32, #tpu.memory_space<vmem>>, vector<1x4x256xf32>
    %87 = vector.shape_cast %86 : vector<1x4x256xf32> to vector<4x256xf32>
    %88 = arith.addf %87, %85 : vector<4x256xf32>
    %c0_18 = arith.constant 0 : index
    %c0_19 = arith.constant 0 : index
    %c0_20 = arith.constant 0 : index
    %89 = vector.load %arg5[%c0_18, %c0_19, %c0_20] : memref<2x4x256xf32, #tpu.memory_space<vmem>>, vector<1x4x256xf32>
    %90 = vector.shape_cast %89 : vector<1x4x256xf32> to vector<4x256xf32>
    %91 = vector.shape_cast %88 : vector<4x256xf32> to vector<1x4x256xf32>
    tpu.vector_store %arg5[%c0_18, %c0_19, %c0_20], %91 {strides = array<i32>} : memref<2x4x256xf32, #tpu.memory_space<vmem>>, vector<1x4x256xf32>,
    %c1 = arith.constant 1 : index
    %c0_21 = arith.constant 0 : index
    %c0_22 = arith.constant 0 : index
    %92 = vector.load %arg2[%c1, %c0_21, %c0_22] : memref<2x4x256xf32, #tpu.memory_space<vmem>>, vector<1x4x256xf32>
    %93 = vector.shape_cast %92 : vector<1x4x256xf32> to vector<4x256xf32>
    %c1_i32_23 = arith.constant 1 : i32
    %94 = tpu.dynamic_rotate %93 by %c1_i32_23 dim 1 : vector<4x256xf32>, i32 -> vector<4x256xf32>
    %c255_i32_24 = arith.constant 255 : i32
    %95 = tpu.dynamic_rotate %93 by %c255_i32_24 dim 1 : vector<4x256xf32>, i32 -> vector<4x256xf32>
    %96 = vector.broadcast %20 : vector<1x256xf32> to vector<4x256xf32>
    %97 = arith.mulf %94, %96 : vector<4x256xf32>
    %98 = arith.addf %93, %97 : vector<4x256xf32>
    %99 = vector.broadcast %24 : vector<1x256xf32> to vector<4x256xf32>
    %100 = arith.mulf %95, %99 : vector<4x256xf32>
    %101 = arith.addf %98, %100 : vector<4x256xf32>
    %c16_i32_25 = arith.constant 16 : i32
    %102 = tpu.dynamic_rotate %101 by %c16_i32_25 dim 1 : vector<4x256xf32>, i32 -> vector<4x256xf32>
    %c240_i32_26 = arith.constant 240 : i32
    %103 = tpu.dynamic_rotate %101 by %c240_i32_26 dim 1 : vector<4x256xf32>, i32 -> vector<4x256xf32>
    %104 = vector.broadcast %28 : vector<1x256xf32> to vector<4x256xf32>
    %105 = arith.mulf %102, %104 : vector<4x256xf32>
    %106 = arith.addf %101, %105 : vector<4x256xf32>
    %107 = vector.broadcast %32 : vector<1x256xf32> to vector<4x256xf32>
    %108 = arith.mulf %103, %107 : vector<4x256xf32>
    %109 = arith.addf %106, %108 : vector<4x256xf32>
    %cst_27 = arith.constant 0.111111112 : f32
    %110 = vector.broadcast %cst_27 : f32 to vector<4x256xf32>
    %111 = arith.mulf %109, %110 : vector<4x256xf32>
    %112 = arith.subf %93, %111 : vector<4x256xf32>
    %113 = vector.extract_strided_slice %33 {offsets = [0, 0], sizes = [4, 1], strides = [1, 1]} : vector<4x4xf32> to vector<4x1xf32>
    %114 = vector.extract_strided_slice %112 {offsets = [0, 0], sizes = [1, 256], strides = [1, 1]} : vector<4x256xf32> to vector<1x256xf32>
    %115 = vector.broadcast %113 : vector<4x1xf32> to vector<4x256xf32>
    %116 = vector.broadcast %114 : vector<1x256xf32> to vector<4x256xf32>
    %117 = arith.mulf %115, %116 : vector<4x256xf32>
    %118 = vector.extract_strided_slice %33 {offsets = [0, 1], sizes = [4, 1], strides = [1, 1]} : vector<4x4xf32> to vector<4x1xf32>
    %119 = vector.extract_strided_slice %112 {offsets = [1, 0], sizes = [1, 256], strides = [1, 1]} : vector<4x256xf32> to vector<1x256xf32>
    %120 = vector.broadcast %118 : vector<4x1xf32> to vector<4x256xf32>
    %121 = vector.broadcast %119 : vector<1x256xf32> to vector<4x256xf32>
    %122 = arith.mulf %120, %121 : vector<4x256xf32>
    %123 = arith.addf %117, %122 : vector<4x256xf32>
    %124 = vector.extract_strided_slice %33 {offsets = [0, 2], sizes = [4, 1], strides = [1, 1]} : vector<4x4xf32> to vector<4x1xf32>
    %125 = vector.extract_strided_slice %112 {offsets = [2, 0], sizes = [1, 256], strides = [1, 1]} : vector<4x256xf32> to vector<1x256xf32>
    %126 = vector.broadcast %124 : vector<4x1xf32> to vector<4x256xf32>
    %127 = vector.broadcast %125 : vector<1x256xf32> to vector<4x256xf32>
    %128 = arith.mulf %126, %127 : vector<4x256xf32>
    %129 = arith.addf %123, %128 : vector<4x256xf32>
    %130 = vector.extract_strided_slice %33 {offsets = [0, 3], sizes = [4, 1], strides = [1, 1]} : vector<4x4xf32> to vector<4x1xf32>
    %131 = vector.extract_strided_slice %112 {offsets = [3, 0], sizes = [1, 256], strides = [1, 1]} : vector<4x256xf32> to vector<1x256xf32>
    %132 = vector.broadcast %130 : vector<4x1xf32> to vector<4x256xf32>
    %133 = vector.broadcast %131 : vector<1x256xf32> to vector<4x256xf32>
    %134 = arith.mulf %132, %133 : vector<4x256xf32>
    %135 = arith.addf %129, %134 : vector<4x256xf32>
    %136 = vector.broadcast %34 : vector<4x1xf32> to vector<4x256xf32>
    %137 = arith.addf %135, %136 : vector<4x256xf32>
    %138 = arith.negf %137 : vector<4x256xf32>
    %139 = math.exp %138 : vector<4x256xf32>
    %cst_28 = arith.constant 1.000000e+00 : f32
    %140 = vector.broadcast %cst_28 : f32 to vector<4x256xf32>
    %141 = arith.addf %140, %139 : vector<4x256xf32>
    %142 = arith.divf %140, %141 : vector<4x256xf32>
    %c1_29 = arith.constant 1 : index
    %c0_30 = arith.constant 0 : index
    %c0_31 = arith.constant 0 : index
    %143 = vector.load %arg2[%c1_29, %c0_30, %c0_31] : memref<2x4x256xf32, #tpu.memory_space<vmem>>, vector<1x4x256xf32>
    %144 = vector.shape_cast %143 : vector<1x4x256xf32> to vector<4x256xf32>
    %145 = arith.addf %144, %142 : vector<4x256xf32>
    %c1_32 = arith.constant 1 : index
    %c0_33 = arith.constant 0 : index
    %c0_34 = arith.constant 0 : index
    %146 = vector.load %arg5[%c1_32, %c0_33, %c0_34] : memref<2x4x256xf32, #tpu.memory_space<vmem>>, vector<1x4x256xf32>
    %147 = vector.shape_cast %146 : vector<1x4x256xf32> to vector<4x256xf32>
    %148 = vector.shape_cast %145 : vector<4x256xf32> to vector<1x4x256xf32>
    tpu.vector_store %arg5[%c1_32, %c0_33, %c0_34], %148 {strides = array<i32>} : memref<2x4x256xf32, #tpu.memory_space<vmem>>, vector<1x4x256xf32>,
    return
  }
  func.func @transform_0(%arg0: i32, %arg1: i32) -> (i32, i32, i32) {
    %c0_i32 = arith.constant 0 : i32
    %c0_i32_0 = arith.constant 0 : i32
    return %arg0, %c0_i32, %arg1 : i32, i32, i32
  }
  func.func @transform_1(%arg0: i32, %arg1: i32) -> (i32, i32) {
    %c0_i32 = arith.constant 0 : i32
    %c0_i32_0 = arith.constant 0 : i32
    %c0_i32_1 = arith.constant 0 : i32
    return %c0_i32, %c0_i32_0 : i32, i32
  }
  func.func @transform_2(%arg0: i32, %arg1: i32) -> (i32, i32) {
    %c0_i32 = arith.constant 0 : i32
    %c0_i32_0 = arith.constant 0 : i32
    %c0_i32_1 = arith.constant 0 : i32
    return %c0_i32, %c0_i32_0 : i32, i32
  }
  func.func @transform_3(%arg0: i32, %arg1: i32) -> (i32, i32, i32) {
    %c0_i32 = arith.constant 0 : i32
    %c0_i32_0 = arith.constant 0 : i32
    return %arg0, %c0_i32, %arg1 : i32, i32, i32
  }
}

</mosaic_0001>

<llo_original>
// kernel: tpu_custom_call.1
$region0: #{tpu_custom_call.1}
  #allocation0 [shape = 'u32[]', space=smem, size = 0x4, offset = 0x4, fixed_abs, tag = 'smem constant byte address 0x4 - core index']
  #allocation1 [shape = 'u32[144,128]{1,0:T(1,128)}', space=vmem, size = 0x12000, scoped, tag = 'internal scratch']
  %s0 = inlined_call_operand.hbm [shape: f32[2,4,256], index: 0, kind: input, shape index: {}]
  %s1 = inlined_call_operand.vmem [shape: f32[4,4], index: 1, kind: input, shape index: {}]
  %s2 = inlined_call_operand.vmem [shape: f32[4,1], index: 2, kind: input, shape index: {}]
  %s3 = inlined_call_operand.hbm [shape: f32[2,4,256], index: 3, kind: output, shape index: {}]
  %s4 = sld [smem:[#allocation0]]
  $region26: #{tpu_custom_call.1} parent=0
    _
  %s6 = ssub.s32 1, %s4
  %s7 = scalar_select 0, %s6, %s4
  $region1: #{tpu_custom_call.1} parent=0
    #allocation2 [shape = 'u8[8192]{0}', space=vmem, size = 0x2000, scoped, tag = 'input window, operand 0, single buffered']
    #allocation3 [shape = 's32[1]{0}', space=sflag, size = 0x4, scoped, tag = 'scoped memory for tpu_custom_call.1']
    #allocation4 [shape = 's32[1]{0}', space=sflag, size = 0x4, scoped, tag = 'scoped memory for tpu_custom_call.1']
    #allocation5 [shape = 'u8[8192]{0}', space=vmem, size = 0x2000, scoped, tag = 'output window, operand 0, single buffered']
    %8 = vsyncpa [#allocation3], 0
    %9 = vsyncpa [#allocation4], 0
    // Predicated region
    $region2: #{tpu_custom_call.1} parent=1 // pred_check
      _
    $region3: #{tpu_custom_call.1} parent=1 // pred_check_branch
      %11 = sbr.rel (0) target = $region5
    $region4: #{tpu_custom_call.1} parent=1 // pred_region
      %s13 = ssub.s32 256, 256
      %14 = vsyncadd [#allocation3], %s13
      %s15 = sshll.u32 [#allocation2], 4
      %s16 = int_to_ptr.vmem [resolvable:$true] %s15
      %21 = dma.hbm_to_vmem [thread:$0]  %s0, 256, %s16, [#allocation3], 128, 128, 8
    $region5: #{tpu_custom_call.1} parent=1 // pred_fallthru
      _
    // Predicated region
    $region6: #{tpu_custom_call.1} parent=1 // pred_check
      _
    $region7: #{tpu_custom_call.1} parent=1 // pred_check_branch
      %23 = sbr.rel (0) target = $region9
    $region8: #{tpu_custom_call.1} parent=1 // pred_region
      _
    $region9: #{tpu_custom_call.1} parent=1 // pred_fallthru
      _
    // Predicated region
    $region10: #{tpu_custom_call.1} parent=1 // pred_check
      _
    $region11: #{tpu_custom_call.1} parent=1 // pred_check_branch
      %25 = sbr.rel (0) target = $region13
    $region12: #{tpu_custom_call.1} parent=1 // pred_region
      _
    $region13: #{tpu_custom_call.1} parent=1 // pred_fallthru
      _
    // Predicated region
    $region14: #{tpu_custom_call.1} parent=1 // pred_check
      _
    $region15: #{tpu_custom_call.1} parent=1 // pred_check_branch
      %27 = sbr.rel (0) target = $region17
    $region16: #{tpu_custom_call.1} parent=1 // pred_region
      %28 = dma.done [#allocation3], 256
    $region17: #{tpu_custom_call.1} parent=1 // pred_fallthru
      _
    %v29 = vlaneseq
    %v30 = vand.u32 %v29, 127
    %v31 = vadd.s32 %v30, 128
    %vm32 = vcmp.lt.s32.totalorder %v30, 0
    %v33 = vsub.s32 0, %v30
    %v34 = vsel %vm32, %v33, %v30
    %v35 = vshrl.u32 %v34, 4
    %v36 = vand.u32 %v34, 15
    %v37 = vsub.s32 0, %v36
    %v38 = vsel %vm32, %v37, %v36
    %vm39 = vcmp.lt.s32.totalorder %v31, 0
    %v40 = vsub.s32 0, %v31
    %v41 = vsel %vm39, %v40, %v31
    %v42 = vshrl.u32 %v41, 4
    %v43 = vand.u32 %v41, 15
    %v44 = vsub.s32 0, %v43
    %v45 = vsel %vm39, %v44, %v43
    %vm46 = vcmp.ne.s32.totalorder %v38, 0
    %vm47 = vcmp.ne.s32.totalorder %v45, 0
    %vm48 = vcmp.lt.s32.totalorder %v38, 0
    %vm49 = vcmp.lt.s32.totalorder %v45, 0
    %vm50 = vmand %vm48, %vm46
    %vm51 = vmand %vm49, %vm47
    %v52 = vadd.s32 %v38, 16
    %v53 = vadd.s32 %v45, 16
    %v54 = vsel %vm50, %v52, %v38
    %v55 = vsel %vm51, %v53, %v45
    %vm56 = vcmp.ne.s32.totalorder %v54, 0
    %vm57 = vcmp.ne.s32.totalorder %v55, 0
    %v58 = vsel %vm56, 1, 0
    %v59 = vsel %vm57, 1, 0
    %v60 = vcvt.s32.f32 %v58
    %v61 = vcvt.s32.f32 %v59
    %vm62 = vcmp.ne.s32.totalorder %v54, 15
    %vm63 = vcmp.ne.s32.totalorder %v55, 15
    %v64 = vsel %vm62, 1, 0
    %v65 = vsel %vm63, 1, 0
    %v66 = vcvt.s32.f32 %v64
    %v67 = vcvt.s32.f32 %v65
    %vm68 = vcmp.ge.s32.totalorder %v30, 16
    %vm69 = vcmp.ge.s32.totalorder %v31, 16
    %v70 = vsel %vm68, 1, 0
    %v71 = vsel %vm69, 1, 0
    %v72 = vcvt.s32.f32 %v70
    %v73 = vcvt.s32.f32 %v71
    %vm74 = vcmp.lt.s32.totalorder %v30, 240
    %vm75 = vcmp.lt.s32.totalorder %v31, 240
    %v76 = vsel %vm74, 1, 0
    %v77 = vsel %vm75, 1, 0
    %v78 = vcvt.s32.f32 %v76
    %v79 = vcvt.s32.f32 %v77
    %v80 = vld [vmem:[%s1] sm:$0xf]
    %v81 = vld [vmem:[%s2] sm:$0xf]
    %v82 = vld [vmem:[#allocation2] sm:$0xff]
    %v84 = vcombine.high %v82, %v82
    %86 = vrot.lane.b32.xlu0 %v82, 1
    %v87 = vpop.permute.xlu0 %86
    %88 = vrot.lane.b32.xlu0 %v84, 1
    %v89 = vpop.permute.xlu0 %88
    %vm90 = vcmp.lt.s32.totalorder %v30, 1
    %v91 = vsel %vm90, %v87, %v89
    %v92 = vsel %vm90, %v89, %v87
    %93 = vrot.lane.b32.xlu0 %v82, 127
    %v94 = vpop.permute.xlu0 %93
    %95 = vrot.lane.b32.xlu0 %v84, 127
    %v96 = vpop.permute.xlu0 %95
    %vm97 = vcmp.lt.s32.totalorder %v30, 127
    %v98 = vsel %vm97, %v94, %v96
    %v99 = vsel %vm97, %v96, %v94
    %v100 = vmul.f32 %v92, %v60
    %v101 = vmul.f32 %v91, %v61
    %v104 = vcombine.low %v100, %v101
    %v106 = vadd.f32 %v82, %v104
    %v107 = vmul.f32 %v98, %v66
    %v108 = vmul.f32 %v99, %v67
    %v111 = vcombine.low %v107, %v108
    %v113 = vadd.f32 %v106, %v111
    %v115 = vcombine.high %v113, %v113
    %117 = vrot.lane.b32.xlu0 %v113, 16
    %v118 = vpop.permute.xlu0 %117
    %119 = vrot.lane.b32.xlu0 %v115, 16
    %v120 = vpop.permute.xlu0 %119
    %vm121 = vcmp.lt.s32.totalorder %v30, 16
    %v122 = vsel %vm121, %v118, %v120
    %v123 = vsel %vm121, %v120, %v118
    %124 = vrot.lane.b32.xlu0 %v113, 112
    %v125 = vpop.permute.xlu0 %124
    %126 = vrot.lane.b32.xlu0 %v115, 112
    %v127 = vpop.permute.xlu0 %126
    %vm128 = vcmp.lt.s32.totalorder %v30, 112
    %v129 = vsel %vm128, %v125, %v127
    %v130 = vsel %vm128, %v127, %v125
    %v131 = vmul.f32 %v123, %v72
    %v132 = vmul.f32 %v122, %v73
    %v135 = vcombine.low %v131, %v132
    %v137 = vadd.f32 %v113, %v135
    %v138 = vmul.f32 %v129, %v78
    %v139 = vmul.f32 %v130, %v79
    %v142 = vcombine.low %v138, %v139
    %v144 = vadd.f32 %v137, %v142
    %v145 = vmul.f32 %v144, 0.11111111
    %v146 = vsub.f32 %v82, %v145
    %148 = vset.pattern.permute.xlu0 0
    %149 = vperm.xlu0 %148, %v80
    %v150 = vpop.permute.xlu0 %149
    %v153 = vlaneseq
    %v154 = vshrl.u32 %v153, 7
    %v155 = vsub.s32 0, %v154
    %v156 = vrot.slane %v146, %v155
    %v157 = vlaneseq
    %v158 = vshrl.u32 %v157, 7
    %v159 = vsub.s32 4, %v158
    %v160 = vrot.slane %v146, %v159
    %v163 = vlaneseq
    %v164 = vshrl.u32 %v163, 7
    %v165 = vsub.s32 0, %v164
    %v166 = vrot.slane %v156, %v165
    %v167 = vlaneseq
    %v168 = vshrl.u32 %v167, 7
    %v169 = vsub.s32 0, %v168
    %v170 = vrot.slane %v160, %v169
    %v171 = vmul.f32 %v150, %v166
    %v172 = vmul.f32 %v150, %v170
    %173 = vset.pattern.permute.xlu0 1
    %174 = vperm.xlu0 %173, %v80
    %v175 = vpop.permute.xlu0 %174
    %v177 = vlaneseq
    %v178 = vshrl.u32 %v177, 7
    %v179 = vsub.s32 1, %v178
    %v180 = vrot.slane %v146, %v179
    %v181 = vlaneseq
    %v182 = vshrl.u32 %v181, 7
    %v183 = vsub.s32 5, %v182
    %v184 = vrot.slane %v146, %v183
    %v187 = vlaneseq
    %v188 = vshrl.u32 %v187, 7
    %v189 = vsub.s32 1, %v188
    %v190 = vrot.slane %v180, %v189
    %v191 = vlaneseq
    %v192 = vshrl.u32 %v191, 7
    %v193 = vsub.s32 1, %v192
    %v194 = vrot.slane %v184, %v193
    %v195 = vmul.f32 %v175, %v190
    %v196 = vmul.f32 %v175, %v194
    %v197 = vadd.f32 %v171, %v195
    %v198 = vadd.f32 %v172, %v196
    %199 = vset.pattern.permute.xlu0 2
    %200 = vperm.xlu0 %199, %v80
    %v201 = vpop.permute.xlu0 %200
    %v203 = vlaneseq
    %v204 = vshrl.u32 %v203, 7
    %v205 = vsub.s32 2, %v204
    %v206 = vrot.slane %v146, %v205
    %v207 = vlaneseq
    %v208 = vshrl.u32 %v207, 7
    %v209 = vsub.s32 6, %v208
    %v210 = vrot.slane %v146, %v209
    %v213 = vlaneseq
    %v214 = vshrl.u32 %v213, 7
    %v215 = vsub.s32 2, %v214
    %v216 = vrot.slane %v206, %v215
    %v217 = vlaneseq
    %v218 = vshrl.u32 %v217, 7
    %v219 = vsub.s32 2, %v218
    %v220 = vrot.slane %v210, %v219
    %v221 = vmul.f32 %v201, %v216
    %v222 = vmul.f32 %v201, %v220
    %v223 = vadd.f32 %v197, %v221
    %v224 = vadd.f32 %v198, %v222
    %225 = vset.pattern.permute.xlu0 3
    %226 = vperm.xlu0 %225, %v80
    %v227 = vpop.permute.xlu0 %226
    %v229 = vlaneseq
    %v230 = vshrl.u32 %v229, 7
    %v231 = vsub.s32 3, %v230
    %v232 = vrot.slane %v146, %v231
    %v233 = vlaneseq
    %v234 = vshrl.u32 %v233, 7
    %v235 = vsub.s32 7, %v234
    %v236 = vrot.slane %v146, %v235
    %v239 = vlaneseq
    %v240 = vshrl.u32 %v239, 7
    %v241 = vsub.s32 3, %v240
    %v242 = vrot.slane %v232, %v241
    %v243 = vlaneseq
    %v244 = vshrl.u32 %v243, 7
    %v245 = vsub.s32 3, %v244
    %v246 = vrot.slane %v236, %v245
    %v247 = vmul.f32 %v227, %v242
    %v248 = vmul.f32 %v227, %v246
    %v249 = vadd.f32 %v223, %v247
    %v250 = vadd.f32 %v224, %v248
    %252 = vset.pattern.permute.xlu0 0
    %253 = vperm.xlu0 %252, %v81
    %v254 = vpop.permute.xlu0 %253
    %v256 = vadd.f32 %v249, %v254
    %v257 = vadd.f32 %v250, %v254
    %v258 = vxor.u32 %v256, 2147483648
    %v259 = vxor.u32 %v257, 2147483648
    %v260 = vmul.f32 %v258, 1.442695
    %v261 = vpow.pop %v260
    %v262 = vmul.f32 %v259, 1.442695
    %v263 = vpow.pop %v262
    %v264 = vadd.f32 %v261, 1.0
    %v265 = vadd.f32 %v263, 1.0
    %v266 = vrcp.pop %v264
    %v267 = vmul.f32 1.0, %v266
    %v268 = vrcp.pop %v265
    %v269 = vmul.f32 1.0, %v268
    %v272 = vcombine.low %v267, %v269
    %v274 = vadd.f32 %v82, %v272
    %275 = vst [vmem:[#allocation5] sm:$0xff] %v274
    %s276 = scalar_lea.vmem [#allocation2], 8
    %v277 = vld [vmem:[%s276] sm:$0xff]
    %v279 = vcombine.high %v277, %v277
    %281 = vrot.lane.b32.xlu0 %v277, 1
    %v282 = vpop.permute.xlu0 %281
    %283 = vrot.lane.b32.xlu0 %v279, 1
    %v284 = vpop.permute.xlu0 %283
    %v285 = vsel %vm90, %v282, %v284
    %v286 = vsel %vm90, %v284, %v282
    %287 = vrot.lane.b32.xlu0 %v277, 127
    %v288 = vpop.permute.xlu0 %287
    %289 = vrot.lane.b32.xlu0 %v279, 127
    %v290 = vpop.permute.xlu0 %289
    %v291 = vsel %vm97, %v288, %v290
    %v292 = vsel %vm97, %v290, %v288
    %v293 = vmul.f32 %v286, %v60
    %v294 = vmul.f32 %v285, %v61
    %v297 = vcombine.low %v293, %v294
    %v299 = vadd.f32 %v277, %v297
    %v300 = vmul.f32 %v291, %v66
    %v301 = vmul.f32 %v292, %v67
    %v304 = vcombine.low %v300, %v301
    %v306 = vadd.f32 %v299, %v304
    %v308 = vcombine.high %v306, %v306
    %310 = vrot.lane.b32.xlu0 %v306, 16
    %v311 = vpop.permute.xlu0 %310
    %312 = vrot.lane.b32.xlu0 %v308, 16
    %v313 = vpop.permute.xlu0 %312
    %v314 = vsel %vm121, %v311, %v313
    %v315 = vsel %vm121, %v313, %v311
    %316 = vrot.lane.b32.xlu0 %v306, 112
    %v317 = vpop.permute.xlu0 %316
    %318 = vrot.lane.b32.xlu0 %v308, 112
    %v319 = vpop.permute.xlu0 %318
    %v320 = vsel %vm128, %v317, %v319
    %v321 = vsel %vm128, %v319, %v317
    %v322 = vmul.f32 %v315, %v72
    %v323 = vmul.f32 %v314, %v73
    %v326 = vcombine.low %v322, %v323
    %v328 = vadd.f32 %v306, %v326
    %v329 = vmul.f32 %v320, %v78
    %v330 = vmul.f32 %v321, %v79
    %v333 = vcombine.low %v329, %v330
    %v335 = vadd.f32 %v328, %v333
    %v336 = vmul.f32 %v335, 0.11111111
    %v337 = vsub.f32 %v277, %v336
    %v339 = vlaneseq
    %v340 = vshrl.u32 %v339, 7
    %v341 = vsub.s32 0, %v340
    %v342 = vrot.slane %v337, %v341
    %v343 = vlaneseq
    %v344 = vshrl.u32 %v343, 7
    %v345 = vsub.s32 4, %v344
    %v346 = vrot.slane %v337, %v345
    %v349 = vlaneseq
    %v350 = vshrl.u32 %v349, 7
    %v351 = vsub.s32 0, %v350
    %v352 = vrot.slane %v342, %v351
    %v353 = vlaneseq
    %v354 = vshrl.u32 %v353, 7
    %v355 = vsub.s32 0, %v354
    %v356 = vrot.slane %v346, %v355
    %v357 = vmul.f32 %v150, %v352
    %v358 = vmul.f32 %v150, %v356
    %v359 = vlaneseq
    %v360 = vshrl.u32 %v359, 7
    %v361 = vsub.s32 1, %v360
    %v362 = vrot.slane %v337, %v361
    %v363 = vlaneseq
    %v364 = vshrl.u32 %v363, 7
    %v365 = vsub.s32 5, %v364
    %v366 = vrot.slane %v337, %v365
    %v369 = vlaneseq
    %v370 = vshrl.u32 %v369, 7
    %v371 = vsub.s32 1, %v370
    %v372 = vrot.slane %v362, %v371
    %v373 = vlaneseq
    %v374 = vshrl.u32 %v373, 7
    %v375 = vsub.s32 1, %v374
    %v376 = vrot.slane %v366, %v375
    %v377 = vmul.f32 %v175, %v372
    %v378 = vmul.f32 %v175, %v376
    %v379 = vadd.f32 %v357, %v377
    %v380 = vadd.f32 %v358, %v378
    %v381 = vlaneseq
    %v382 = vshrl.u32 %v381, 7
    %v383 = vsub.s32 2, %v382
    %v384 = vrot.slane %v337, %v383
    %v385 = vlaneseq
    %v386 = vshrl.u32 %v385, 7
    %v387 = vsub.s32 6, %v386
    %v388 = vrot.slane %v337, %v387
    %v391 = vlaneseq
    %v392 = vshrl.u32 %v391, 7
    %v393 = vsub.s32 2, %v392
    %v394 = vrot.slane %v384, %v393
    %v395 = vlaneseq
    %v396 = vshrl.u32 %v395, 7
    %v397 = vsub.s32 2, %v396
    %v398 = vrot.slane %v388, %v397
    %v399 = vmul.f32 %v201, %v394
    %v400 = vmul.f32 %v201, %v398
    %v401 = vadd.f32 %v379, %v399
    %v402 = vadd.f32 %v380, %v400
    %v403 = vlaneseq
    %v404 = vshrl.u32 %v403, 7
    %v405 = vsub.s32 3, %v404
    %v406 = vrot.slane %v337, %v405
    %v407 = vlaneseq
    %v408 = vshrl.u32 %v407, 7
    %v409 = vsub.s32 7, %v408
    %v410 = vrot.slane %v337, %v409
    %v413 = vlaneseq
    %v414 = vshrl.u32 %v413, 7
    %v415 = vsub.s32 3, %v414
    %v416 = vrot.slane %v406, %v415
    %v417 = vlaneseq
    %v418 = vshrl.u32 %v417, 7
    %v419 = vsub.s32 3, %v418
    %v420 = vrot.slane %v410, %v419
    %v421 = vmul.f32 %v227, %v416
    %v422 = vmul.f32 %v227, %v420
    %v423 = vadd.f32 %v401, %v421
    %v424 = vadd.f32 %v402, %v422
    %v425 = vadd.f32 %v423, %v254
    %v426 = vadd.f32 %v424, %v254
    %v427 = vxor.u32 %v425, 2147483648
    %v428 = vxor.u32 %v426, 2147483648
    %v429 = vmul.f32 %v427, 1.442695
    %v430 = vpow.pop %v429
    %v431 = vmul.f32 %v428, 1.442695
    %v432 = vpow.pop %v431
    %v433 = vadd.f32 %v430, 1.0
    %v434 = vadd.f32 %v432, 1.0
    %v435 = vrcp.pop %v433
    %v436 = vmul.f32 1.0, %v435
    %v437 = vrcp.pop %v434
    %v438 = vmul.f32 1.0, %v437
    %v441 = vcombine.low %v436, %v438
    %v443 = vadd.f32 %v277, %v441
    %s444 = scalar_lea.vmem [#allocation5], 8
    %445 = vst [vmem:[%s444] sm:$0xff] %v443
    // Predicated region
    $region18: #{tpu_custom_call.1} parent=1 // pred_check
      _
    $region19: #{tpu_custom_call.1} parent=1 // pred_check_branch
      %447 = sbr.rel (0) target = $region21
    $region20: #{tpu_custom_call.1} parent=1 // pred_region
      %s449 = ssub.s32 256, 256
      %450 = vsyncadd [#allocation4], %s449
      %s451 = sshll.u32 [#allocation5], 4
      %s452 = int_to_ptr.vmem [resolvable:$true] %s451
      %457 = dma.vmem_to_hbm [thread:$0]  %s452, 256, %s3, [#allocation4], 128, 128, 8
    $region21: #{tpu_custom_call.1} parent=1 // pred_fallthru
      _
    // Predicated region
    $region22: #{tpu_custom_call.1} parent=1 // pred_check
      _
    $region23: #{tpu_custom_call.1} parent=1 // pred_check_branch
      %459 = sbr.rel (0) target = $region25
    $region24: #{tpu_custom_call.1} parent=1 // pred_region
      %460 = dma.done [#allocation4], 256
    $region25: #{tpu_custom_call.1} parent=1 // pred_fallthru
      _
    %461 = vsyncpa [#allocation3], 1
    %462 = vsyncpa [#allocation4], 1

</llo_original>
